<compile_context>
chip_gen: v6e
topology: v6e:2x2x1
jax: 0.10.0
libtpu: 0.0.40
codegen_flags: <defaults>
</compile_context>

<pallas_src>
import functools

import jax
import jax.numpy as jnp
from jax.experimental import pallas as pl
from jax.experimental.pallas import tpu as pltpu

# Safe on v5e (128 MiB phys, 16 MiB scoped default), v6e (128 MiB) and
# v7x (64 MiB phys, 32 MiB scoped default). Tiles below are sized well under it.
_VMEM_LIMIT = 32 * 1024 * 1024


def _round_up(x, m):
    return (x + m - 1) // m * m


def _row_multiple(dtype):
    # (8,128) f32 tiling; sub-32-bit dtypes pack 2x along sublanes.
    return 8 if jnp.dtype(dtype).itemsize == 4 else 16


# --------------------------------------------------------------------------
# Kernels
# --------------------------------------------------------------------------
def _layernorm_kernel(x_ref, g_ref, b_ref, o_ref, *, eps):
    # Standalone LN (generic fallback path). x_ref: (TM, D); g/b: (1, D) f32.
    x = x_ref[...].astype(jnp.float32)
    mean = jnp.mean(x, axis=-1, keepdims=True)
    c = x - mean
    var = jnp.mean(c * c, axis=-1, keepdims=True)
    y = c * jax.lax.rsqrt(var + eps) * g_ref[...] + b_ref[...]
    o_ref[...] = y.astype(o_ref.dtype)


def _ln_linear_kernel(x_ref, g_ref, b_ref, w_ref, wb_ref, o_ref, *, eps):
    # Fused: o = (LayerNorm(x) * g + b) @ W + bias
    # x_ref: (TM, Din); w_ref: (Din, TN); wb_ref: (1, TN).
    x = x_ref[...].astype(jnp.float32)
    mean = jnp.mean(x, axis=-1, keepdims=True)
    c = x - mean
    var = jnp.mean(c * c, axis=-1, keepdims=True)
    xn = c * jax.lax.rsqrt(var + eps) * g_ref[...] + b_ref[...]
    # TODO(synk): for v6e/v7x peak MXU, pass bf16 weights (xn is cast to match);
    # f32 kept here so the demo matches the f32 reference to 1e-4.
    acc = jnp.dot(xn.astype(w_ref.dtype), w_ref[...],
                  preferred_element_type=jnp.float32)
    o_ref[...] = (acc + wb_ref[...]).astype(o_ref.dtype)


def _ln_linear_mean_kernel(ctx_ref, g_ref, b_ref, w_ref, wb_ref, o_ref, acc_ref,
                           *, eps, seq_len, block_rows):
    # Fused: o[b] = mean_m( LayerNorm(ctx[b, m]) ) @ W + bias
    # ctx_ref: (1, TM, Din); acc_ref: (1, Din) f32 VMEM scratch; o_ref: (1, 1, Dout).
    mi = pl.program_id(1)

    @pl.when(mi == 0)
    def _init():
        acc_ref[...] = jnp.zeros_like(acc_ref)

    x = ctx_ref[0].astype(jnp.float32)                      # (TM, Din)
    mean = jnp.mean(x, axis=-1, keepdims=True)
    c = x - mean
    var = jnp.mean(c * c, axis=-1, keepdims=True)
    xn = c * jax.lax.rsqrt(var + eps) * g_ref[...] + b_ref[...]

    # Mask ragged / padded rows so they contribute 0 to the running sum.
    row = mi * block_rows + jax.lax.broadcasted_iota(jnp.int32, xn.shape, 0)
    xn = jnp.where(row < seq_len, xn, 0.0)
    acc_ref[...] += jnp.sum(xn, axis=0, keepdims=True)      # (1, Din)

    @pl.when(mi == pl.num_programs(1) - 1)
    def _finalize():
        pooled = acc_ref[...] * (1.0 / seq_len)             # (1, Din)
        y = jnp.dot(pooled.astype(w_ref.dtype), w_ref[...],
                    preferred_element_type=jnp.float32) + wb_ref[...]
        o_ref[...] = y.reshape(o_ref.shape).astype(o_ref.dtype)


# --------------------------------------------------------------------------
# Wrappers
# --------------------------------------------------------------------------
def layer_norm(x, g, b, *, eps=1e-5, block_rows=512):
    """Standalone LayerNorm over the last dim (generic fallback, big row tiles)."""
    orig = x.shape
    d = orig[-1]
    x2 = x.reshape(-1, d)
    rows = x2.shape[0]
    tm = min(block_rows, _round_up(rows, _row_multiple(x2.dtype)))
    grid = (pl.cdiv(rows, tm),)

    out = pl.pallas_call(
        functools.partial(_layernorm_kernel, eps=eps),
        out_shape=jax.ShapeDtypeStruct((rows, d), x.dtype),
        grid=grid,
        in_specs=[
            pl.BlockSpec((tm, d), lambda i: (i, 0)),
            pl.BlockSpec((1, d), lambda i: (0, 0)),
            pl.BlockSpec((1, d), lambda i: (0, 0)),
        ],
        out_specs=pl.BlockSpec((tm, d), lambda i: (i, 0)),
        compiler_params=pltpu.CompilerParams(
            dimension_semantics=("parallel",),
            vmem_limit_bytes=_VMEM_LIMIT),
    )(x2, g.reshape(1, d).astype(jnp.float32), b.reshape(1, d).astype(jnp.float32))
    return out.reshape(orig)


def fused_layernorm_linear(x, g, b, w, wb, *, eps=1e-5, block_rows=256,
                           block_out=512):
    """y = (LayerNorm(x) * g + b) @ w + wb  over the last dim of x."""
    orig = x.shape
    din = orig[-1]
    dout = w.shape[-1]
    x2 = x.reshape(-1, din)
    rows = x2.shape[0]

    tm = min(block_rows, _round_up(rows, _row_multiple(x2.dtype)))
    if dout % 128 == 0:
        tn = min(block_out, dout)          # lane-dense output tiles
    else:
        tn = dout  # TODO(synk): pad Dout to a multiple of 128 for unmasked stores
    grid = (pl.cdiv(rows, tm), pl.cdiv(dout, tn))

    g2 = g.reshape(1, din).astype(jnp.float32)
    b2 = b.reshape(1, din).astype(jnp.float32)
    wb2 = wb.reshape(1, dout).astype(jnp.float32)

    out = pl.pallas_call(
        functools.partial(_ln_linear_kernel, eps=eps),
        out_shape=jax.ShapeDtypeStruct((rows, dout), x.dtype),
        grid=grid,
        in_specs=[
            pl.BlockSpec((tm, din), lambda i, j: (i, 0)),
            pl.BlockSpec((1, din), lambda i, j: (0, 0)),
            pl.BlockSpec((1, din), lambda i, j: (0, 0)),
            pl.BlockSpec((din, tn), lambda i, j: (0, j)),
            pl.BlockSpec((1, tn), lambda i, j: (0, j)),
        ],
        out_specs=pl.BlockSpec((tm, tn), lambda i, j: (i, j)),
        compiler_params=pltpu.CompilerParams(
            dimension_semantics=("parallel", "parallel"),
            vmem_limit_bytes=_VMEM_LIMIT),
    )(x2, g2, b2, w, wb2)
    return out.reshape(orig[:-1] + (dout,))


def fused_layernorm_linear_mean(ctx, g, b, w, wb, *, eps=1e-5, block_rows=256):
    """pooled = mean_over_seq( LayerNorm(ctx) ) @ w + wb  ->  (B, 1, Dout)."""
    bsz, seq, din = ctx.shape
    dout = w.shape[-1]
    tm = min(block_rows, _round_up(seq, _row_multiple(ctx.dtype)))
    grid = (bsz, pl.cdiv(seq, tm))        # reduction (seq) axis last, "arbitrary"

    g2 = g.reshape(1, din).astype(jnp.float32)
    b2 = b.reshape(1, din).astype(jnp.float32)
    wb2 = wb.reshape(1, dout).astype(jnp.float32)

    out = pl.pallas_call(
        functools.partial(_ln_linear_mean_kernel, eps=eps, seq_len=seq,
                          block_rows=tm),
        out_shape=jax.ShapeDtypeStruct((bsz, 1, dout), ctx.dtype),
        grid=grid,
        in_specs=[
            pl.BlockSpec((1, tm, din), lambda bi, mi: (bi, mi, 0)),
            pl.BlockSpec((1, din), lambda bi, mi: (0, 0)),
            pl.BlockSpec((1, din), lambda bi, mi: (0, 0)),
            pl.BlockSpec((din, dout), lambda bi, mi: (0, 0)),
            pl.BlockSpec((1, dout), lambda bi, mi: (0, 0)),
        ],
        out_specs=pl.BlockSpec((1, 1, dout), lambda bi, mi: (bi, 0, 0)),
        scratch_shapes=[pltpu.VMEM((1, din), jnp.float32)],
        compiler_params=pltpu.CompilerParams(
            dimension_semantics=("parallel", "arbitrary"),
            vmem_limit_bytes=_VMEM_LIMIT),
    )(ctx, g2, b2, w, wb2)
    return out


# --------------------------------------------------------------------------
# PreNorm module (same forward semantics as the PyTorch PreNorm)
# --------------------------------------------------------------------------
class PreNormPallas:
    """PreNorm: LN(x) (and LN(context)) then fn.

    If `fn` advertises `supports_fused_norm`, the LayerNorm parameters are
    handed to fn so it can apply LN inside its fused Pallas kernels (no extra
    HBM round-trip of the normalized tensors). Otherwise a standalone LN
    kernel runs first (generic path).
    """

    def __init__(self, dim, fn, context_dim=None, eps=1e-5):
        self.fn = fn
        self.eps = eps
        # torch.nn.LayerNorm default init: weight = 1, bias = 0, eps = 1e-5.
        self.g = jnp.ones((1, dim), jnp.float32)
        self.b = jnp.zeros((1, dim), jnp.float32)
        self.context_dim = context_dim
        if context_dim is not None:
            self.gc = jnp.ones((1, context_dim), jnp.float32)
            self.bc = jnp.zeros((1, context_dim), jnp.float32)

    def __call__(self, x, **kwargs):
        if getattr(self.fn, "supports_fused_norm", False):
            norm = (self.g, self.b, self.eps)
            if self.context_dim is not None:
                kwargs = dict(kwargs, context_norm=(self.gc, self.bc, self.eps))
            return self.fn(x, norm=norm, **kwargs)
        # Generic (un-fused) path.
        x = layer_norm(x, self.g, self.b, eps=self.eps)
        if self.context_dim is not None:
            ctx = layer_norm(kwargs["context"], self.gc, self.bc, eps=self.eps)
            kwargs = dict(kwargs, context=ctx)
        return self.fn(x, **kwargs)


class FusedLinearFn:
    """Demo `fn`: y = Linear(LN(x)) + mean_seq(Linear(LN(context))).

    Norm-aware: LayerNorm is applied *inside* its fused Pallas kernels.
    """

    supports_fused_norm = True

    def __init__(self, dim, context_dim, dim_out, key):
        k1, k2, k3, k4 = jax.random.split(key, 4)
        self.wq = jax.random.normal(k1, (dim, dim_out), jnp.float32) * 0.05
        self.bq = jax.random.normal(k2, (dim_out,), jnp.float32) * 0.05
        self.wk = jax.random.normal(k3, (context_dim, dim_out), jnp.float32) * 0.05
        self.bk = jax.random.normal(k4, (dim_out,), jnp.float32) * 0.05

    def __call__(self, x, *, norm, context=None, context_norm=None):
        g, b, eps = norm
        y = fused_layernorm_linear(x, g, b, self.wq, self.bq, eps=eps)
        if context is not None:
            gc, bc, ceps = context_norm
            pooled = fused_layernorm_linear_mean(context, gc, bc, self.wk,
                                                 self.bk, eps=ceps)
            y = y + pooled  # (B, N, Dout) + (B, 1, Dout): trivial XLA broadcast add
        return y


# --------------------------------------------------------------------------
# Pure-JAX reference
# --------------------------------------------------------------------------
def _ref_layernorm(x, g, b, eps=1e-5):
    mean = jnp.mean(x, axis=-1, keepdims=True)
    var = jnp.mean((x - mean) ** 2, axis=-1, keepdims=True)
    return (x - mean) * jax.lax.rsqrt(var + eps) * g.reshape(-1) + b.reshape(-1)


if __name__ == "__main__":
    key = jax.random.PRNGKey(0)
    kx, kc, kp = jax.random.split(key, 3)

    # Small but TPU-friendly shapes: lane dims are multiples of 128 so matmul
    # output stores are unmasked (lane-dense). Context seq is ragged (88).
    B, N, D = 2, 64, 128          # x:       (batch, seq, dim)
    M, CD = 88, 128               # context: (batch, ctx_seq, context_dim)
    D_OUT = 128

    x = jax.random.normal(kx, (B, N, D), jnp.float32)
    context = jax.random.normal(kc, (B, M, CD), jnp.float32)

    fn = FusedLinearFn(D, CD, D_OUT, kp)
    prenorm = PreNormPallas(D, fn, context_dim=CD)

    out = jax.block_until_ready(prenorm(x, context=context))
    assert out.shape == (B, N, D_OUT), out.shape

    # Reference check (fused path)
    x_ref = _ref_layernorm(x, prenorm.g, prenorm.b)
    c_ref = _ref_layernorm(context, prenorm.gc, prenorm.bc)
    y_ref = x_ref @ fn.wq + fn.bq + jnp.mean(c_ref @ fn.wk + fn.bk, axis=1,
                                             keepdims=True)
    err = float(jnp.max(jnp.abs(out - y_ref)))
    assert jnp.allclose(out, y_ref, rtol=1e-4, atol=1e-4), err

    # Exercise the multi-step accumulation + ragged-row masking in the
    # context kernel (3 seq tiles of 32 over M=88).
    pooled = jax.block_until_ready(
        fused_layernorm_linear_mean(context, prenorm.gc, prenorm.bc,
                                    fn.wk, fn.bk, block_rows=32))
    pooled_ref = jnp.mean(c_ref @ fn.wk + fn.bk, axis=1, keepdims=True)
    assert jnp.allclose(pooled, pooled_ref, rtol=1e-4, atol=1e-4)

    # Exercise the generic (standalone LayerNorm) fallback kernel once.
    ln_out = jax.block_until_ready(layer_norm(x, prenorm.g, prenorm.b))
    assert jnp.allclose(ln_out, x_ref, rtol=1e-4, atol=1e-4)

    print("KERNEL_OK")
</pallas_src>

<mosaic_0001>
module attributes {stable_mosaic.version = 11 : i64} {
  func.func @_ln_linear_kernel(%arg0: i32, %arg1: i32, %arg2: memref<128x128xf32, #tpu.memory_space<vmem>>, %arg3: memref<1x128xf32, #tpu.memory_space<vmem>>, %arg4: memref<1x128xf32, #tpu.memory_space<vmem>>, %arg5: memref<128x128xf32, #tpu.memory_space<vmem>>, %arg6: memref<1x128xf32, #tpu.memory_space<vmem>>, %arg7: memref<128x128xf32, #tpu.memory_space<vmem>>) attributes {dimension_semantics = [#tpu.dimension_semantics<parallel>, #tpu.dimension_semantics<parallel>], iteration_bounds = array<i64: 1, 1>, scalar_prefetch = 0 : i64, scratch_operands = 0 : i64, tpu.core_type = #tpu.core_type<tc>, window_params = [{transform_indices = @transform_0, window_bounds = array<i64: 128, 128>}, {pipeline_mode = #tpu.pipeline_mode<synchronous>, transform_indices = @transform_1, window_bounds = array<i64: 1, 128>}, {pipeline_mode = #tpu.pipeline_mode<synchronous>, transform_indices = @transform_2, window_bounds = array<i64: 1, 128>}, {transform_indices = @transform_3, window_bounds = array<i64: 128, 128>}, {transform_indices = @transform_4, window_bounds = array<i64: 1, 128>}, {transform_indices = @transform_5, window_bounds = array<i64: 128, 128>}]} {
    %c0 = arith.constant 0 : index
    %c0_0 = arith.constant 0 : index
    %0 = vector.load %arg2[%c0, %c0_0] : memref<128x128xf32, #tpu.memory_space<vmem>>, vector<128x128xf32>
    %cst = arith.constant dense<0.000000e+00> : vector<128xf32>
    %1 = vector.multi_reduction <add>, %0, %cst [1] : vector<128x128xf32> to vector<128xf32>
    %2 = vector.shape_cast %1 : vector<128xf32> to vector<128x1xf32>
    %cst_1 = arith.constant 1.280000e+02 : f32
    %3 = vector.broadcast %cst_1 : f32 to vector<128x1xf32>
    %4 = arith.divf %2, %3 : vector<128x1xf32>
    %5 = vector.broadcast %4 : vector<128x1xf32> to vector<128x128xf32>
    %6 = arith.subf %0, %5 : vector<128x128xf32>
    %7 = arith.mulf %6, %6 : vector<128x128xf32>
    %cst_2 = arith.constant dense<0.000000e+00> : vector<128xf32>
    %8 = vector.multi_reduction <add>, %7, %cst_2 [1] : vector<128x128xf32> to vector<128xf32>
    %9 = vector.shape_cast %8 : vector<128xf32> to vector<128x1xf32>
    %cst_3 = arith.constant 1.280000e+02 : f32
    %10 = vector.broadcast %cst_3 : f32 to vector<128x1xf32>
    %11 = arith.divf %9, %10 : vector<128x1xf32>
    %cst_4 = arith.constant 9.99999974E-6 : f32
    %12 = vector.broadcast %cst_4 : f32 to vector<128x1xf32>
    %13 = arith.addf %11, %12 : vector<128x1xf32>
    %14 = math.rsqrt %13 : vector<128x1xf32>
    %15 = vector.broadcast %14 : vector<128x1xf32> to vector<128x128xf32>
    %16 = arith.mulf %6, %15 : vector<128x128xf32>
    %c0_5 = arith.constant 0 : index
    %c0_6 = arith.constant 0 : index
    %17 = vector.load %arg3[%c0_5, %c0_6] : memref<1x128xf32, #tpu.memory_space<vmem>>, vector<1x128xf32>
    %18 = vector.broadcast %17 : vector<1x128xf32> to vector<128x128xf32>
    %19 = arith.mulf %16, %18 : vector<128x128xf32>
    %c0_7 = arith.constant 0 : index
    %c0_8 = arith.constant 0 : index
    %20 = vector.load %arg4[%c0_7, %c0_8] : memref<1x128xf32, #tpu.memory_space<vmem>>, vector<1x128xf32>
    %21 = vector.broadcast %20 : vector<1x128xf32> to vector<128x128xf32>
    %22 = arith.addf %19, %21 : vector<128x128xf32>
    %c0_9 = arith.constant 0 : index
    %c0_10 = arith.constant 0 : index
    %23 = vector.load %arg5[%c0_9, %c0_10] : memref<128x128xf32, #tpu.memory_space<vmem>>, vector<128x128xf32>
    %cst_11 = arith.constant dense<0.000000e+00> : vector<128x128xf32>
    %24 = tpu.matmul %22, %23, %cst_11 {dimension_numbers = #tpu.dot_dimension_numbers<[1], [0], [0], [1], [0, 0, 1, 1], [], []>} : vector<128x128xf32>, vector<128x128xf32>, vector<128x128xf32> -> vector<128x128xf32>
    %c0_12 = arith.constant 0 : index
    %c0_13 = arith.constant 0 : index
    %25 = vector.load %arg6[%c0_12, %c0_13] : memref<1x128xf32, #tpu.memory_space<vmem>>, vector<1x128xf32>
    %26 = vector.broadcast %25 : vector<1x128xf32> to vector<128x128xf32>
    %27 = arith.addf %24, %26 : vector<128x128xf32>
    %c0_14 = arith.constant 0 : index
    %c0_15 = arith.constant 0 : index
    %28 = vector.load %arg7[%c0_14, %c0_15] : memref<128x128xf32, #tpu.memory_space<vmem>>, vector<128x128xf32>
    tpu.vector_store %arg7[%c0_14, %c0_15], %27 {strides = array<i32>} : memref<128x128xf32, #tpu.memory_space<vmem>>, vector<128x128xf32>,
    return
  }
  func.func @transform_0(%arg0: i32, %arg1: i32) -> (i32, i32) {
    %c0_i32 = arith.constant 0 : i32
    %c0_i32_0 = arith.constant 0 : i32
    return %arg0, %c0_i32 : i32, i32
  }
  func.func @transform_1(%arg0: i32, %arg1: i32) -> (i32, i32) {
    %c0_i32 = arith.constant 0 : i32
    %c0_i32_0 = arith.constant 0 : i32
    %c0_i32_1 = arith.constant 0 : i32
    return %c0_i32, %c0_i32_0 : i32, i32
  }
  func.func @transform_2(%arg0: i32, %arg1: i32) -> (i32, i32) {
    %c0_i32 = arith.constant 0 : i32
    %c0_i32_0 = arith.constant 0 : i32
    %c0_i32_1 = arith.constant 0 : i32
    return %c0_i32, %c0_i32_0 : i32, i32
  }
  func.func @transform_3(%arg0: i32, %arg1: i32) -> (i32, i32) {
    %c0_i32 = arith.constant 0 : i32
    %c0_i32_0 = arith.constant 0 : i32
    return %c0_i32, %arg1 : i32, i32
  }
  func.func @transform_4(%arg0: i32, %arg1: i32) -> (i32, i32) {
    %c0_i32 = arith.constant 0 : i32
    %c0_i32_0 = arith.constant 0 : i32
    return %c0_i32, %arg1 : i32, i32
  }
  func.func @transform_5(%arg0: i32, %arg1: i32) -> (i32, i32) {
    %c0_i32 = arith.constant 0 : i32
    return %arg0, %arg1 : i32, i32
  }
}

</mosaic_0001>

<llo_original>
// kernel: tpu_custom_call.1
$region0: #{tpu_custom_call.1}
  #allocation0 [shape = 'u32[]', space=smem, size = 0x4, offset = 0x4, fixed_abs, tag = 'smem constant byte address 0x4 - core index']
  #allocation1 [shape = 'u32[144,128]{1,0:T(1,128)}', space=vmem, size = 0x12000, scoped, tag = 'internal scratch']
  %s0 = inlined_call_operand.hbm [shape: f32[128,128], index: 0, kind: input, shape index: {}]
  %s1 = inlined_call_operand.vmem [shape: f32[1,128], index: 1, kind: input, shape index: {}]
  %s2 = inlined_call_operand.vmem [shape: f32[1,128], index: 2, kind: input, shape index: {}]
  %s3 = inlined_call_operand.hbm [shape: f32[128,128], index: 3, kind: input, shape index: {}]
  %s4 = inlined_call_operand.vmem [shape: f32[1,128], index: 4, kind: input, shape index: {}]
  %s5 = inlined_call_operand.hbm [shape: f32[128,128], index: 5, kind: output, shape index: {}]
  %s6 = sld [smem:[#allocation0]]
  $region38: #{tpu_custom_call.1} parent=0
    _
  %s8 = ssub.s32 1, %s6
  %s9 = scalar_select 0, %s8, %s6
  $region1: #{tpu_custom_call.1} parent=0
    #allocation2 [shape = 'u8[65536]{0}', space=vmem, size = 0x10000, scoped, tag = 'input window, operand 0, single buffered']
    #allocation3 [shape = 's32[1]{0}', space=sflag, size = 0x4, scoped, tag = 'scoped memory for tpu_custom_call.1']
    #allocation4 [shape = 's32[1]{0}', space=sflag, size = 0x4, scoped, tag = 'scoped memory for tpu_custom_call.1']
    #allocation5 [shape = 'u8[65536]{0}', space=vmem, size = 0x10000, scoped, tag = 'input window, operand 3, single buffered']
    #allocation6 [shape = 's32[1]{0}', space=sflag, size = 0x4, scoped, tag = 'scoped memory for tpu_custom_call.1']
    #allocation7 [shape = 'u8[65536]{0}', space=vmem, size = 0x10000, scoped, tag = 'output window, operand 0, single buffered']
    %10 = vsyncpa [#allocation3], 0
    %11 = vsyncpa [#allocation6], 0
    %12 = vsyncpa [#allocation4], 0
    // Predicated region
    $region2: #{tpu_custom_call.1} parent=1 // pred_check
      _
    $region3: #{tpu_custom_call.1} parent=1 // pred_check_branch
      %14 = sbr.rel (0) target = $region5
    $region4: #{tpu_custom_call.1} parent=1 // pred_region
      %s16 = ssub.s32 2048, 2048
      %17 = vsyncadd [#allocation3], %s16
      %s18 = sshll.u32 [#allocation2], 4
      %s19 = int_to_ptr.vmem [resolvable:$true] %s18
      %24 = dma.hbm_to_vmem [thread:$0]  %s0, 2048, %s19, [#allocation3], 128, 128, 8
    $region5: #{tpu_custom_call.1} parent=1 // pred_fallthru
      _
    // Predicated region
    $region6: #{tpu_custom_call.1} parent=1 // pred_check
      _
    $region7: #{tpu_custom_call.1} parent=1 // pred_check_branch
      %26 = sbr.rel (0) target = $region9
    $region8: #{tpu_custom_call.1} parent=1 // pred_region
      _
    $region9: #{tpu_custom_call.1} parent=1 // pred_fallthru
      _
    // Predicated region
    $region10: #{tpu_custom_call.1} parent=1 // pred_check
      _
    $region11: #{tpu_custom_call.1} parent=1 // pred_check_branch
      %28 = sbr.rel (0) target = $region13
    $region12: #{tpu_custom_call.1} parent=1 // pred_region
      _
    $region13: #{tpu_custom_call.1} parent=1 // pred_fallthru
      _
    // Predicated region
    $region14: #{tpu_custom_call.1} parent=1 // pred_check
      _
    $region15: #{tpu_custom_call.1} parent=1 // pred_check_branch
      %30 = sbr.rel (0) target = $region17
    $region16: #{tpu_custom_call.1} parent=1 // pred_region
      %s32 = ssub.s32 2048, 2048
      %33 = vsyncadd [#allocation6], %s32
      %s34 = sshll.u32 [#allocation5], 4
      %s35 = int_to_ptr.vmem [resolvable:$true] %s34
      %40 = dma.hbm_to_vmem [thread:$0]  %s3, 2048, %s35, [#allocation6], 128, 128, 8
    $region17: #{tpu_custom_call.1} parent=1 // pred_fallthru
      _
    // Predicated region
    $region18: #{tpu_custom_call.1} parent=1 // pred_check
      _
    $region19: #{tpu_custom_call.1} parent=1 // pred_check_branch
      %42 = sbr.rel (0) target = $region21
    $region20: #{tpu_custom_call.1} parent=1 // pred_region
      _
    $region21: #{tpu_custom_call.1} parent=1 // pred_fallthru
      _
    // Predicated region
    $region22: #{tpu_custom_call.1} parent=1 // pred_check
      _
    $region23: #{tpu_custom_call.1} parent=1 // pred_check_branch
      %44 = sbr.rel (0) target = $region25
    $region24: #{tpu_custom_call.1} parent=1 // pred_region
      %45 = dma.done [#allocation3], 2048
    $region25: #{tpu_custom_call.1} parent=1 // pred_fallthru
      _
    // Predicated region
    $region26: #{tpu_custom_call.1} parent=1 // pred_check
      _
    $region27: #{tpu_custom_call.1} parent=1 // pred_check_branch
      %47 = sbr.rel (0) target = $region29
    $region28: #{tpu_custom_call.1} parent=1 // pred_region
      %48 = dma.done [#allocation6], 2048
    $region29: #{tpu_custom_call.1} parent=1 // pred_fallthru
      _
    %v49 = vld [vmem:[#allocation2] sm:$0xff]
    %v50 = vld [vmem:[#allocation2 + $0x8] sm:$0xff]
    %v51 = vld [vmem:[#allocation2 + $0x10] sm:$0xff]
    %v52 = vld [vmem:[#allocation2 + $0x18] sm:$0xff]
    %v53 = vld [vmem:[#allocation2 + $0x20] sm:$0xff]
    %v54 = vld [vmem:[#allocation2 + $0x28] sm:$0xff]
    %v55 = vld [vmem:[#allocation2 + $0x30] sm:$0xff]
    %v56 = vld [vmem:[#allocation2 + $0x38] sm:$0xff]
    %v57 = vld [vmem:[#allocation2 + $0x40] sm:$0xff]
    %v58 = vld [vmem:[#allocation2 + $0x48] sm:$0xff]
    %v59 = vld [vmem:[#allocation2 + $0x50] sm:$0xff]
    %v60 = vld [vmem:[#allocation2 + $0x58] sm:$0xff]
    %v61 = vld [vmem:[#allocation2 + $0x60] sm:$0xff]
    %v62 = vld [vmem:[#allocation2 + $0x68] sm:$0xff]
    %v63 = vld [vmem:[#allocation2 + $0x70] sm:$0xff]
    %v64 = vld [vmem:[#allocation2 + $0x78] sm:$0xff]
    %65 = vadd.xlane.f32.xlu0 %v49
    %v66 = vpop.xlane.xlu0 %65
    %67 = vadd.xlane.f32.xlu0 %v50
    %v68 = vpop.xlane.xlu0 %67
    %69 = vadd.xlane.f32.xlu0 %v51
    %v70 = vpop.xlane.xlu0 %69
    %71 = vadd.xlane.f32.xlu0 %v52
    %v72 = vpop.xlane.xlu0 %71
    %73 = vadd.xlane.f32.xlu0 %v53
    %v74 = vpop.xlane.xlu0 %73
    %75 = vadd.xlane.f32.xlu0 %v54
    %v76 = vpop.xlane.xlu0 %75
    %77 = vadd.xlane.f32.xlu0 %v55
    %v78 = vpop.xlane.xlu0 %77
    %79 = vadd.xlane.f32.xlu0 %v56
    %v80 = vpop.xlane.xlu0 %79
    %81 = vadd.xlane.f32.xlu0 %v57
    %v82 = vpop.xlane.xlu0 %81
    %83 = vadd.xlane.f32.xlu0 %v58
    %v84 = vpop.xlane.xlu0 %83
    %85 = vadd.xlane.f32.xlu0 %v59
    %v86 = vpop.xlane.xlu0 %85
    %87 = vadd.xlane.f32.xlu0 %v60
    %v88 = vpop.xlane.xlu0 %87
    %89 = vadd.xlane.f32.xlu0 %v61
    %v90 = vpop.xlane.xlu0 %89
    %91 = vadd.xlane.f32.xlu0 %v62
    %v92 = vpop.xlane.xlu0 %91
    %93 = vadd.xlane.f32.xlu0 %v63
    %v94 = vpop.xlane.xlu0 %93
    %95 = vadd.xlane.f32.xlu0 %v64
    %v96 = vpop.xlane.xlu0 %95
    %v97 = vrcp.pop 128.0
    %v98 = vmul.f32 %v66, %v97
    %v99 = vmul.f32 %v68, %v97
    %v100 = vmul.f32 %v70, %v97
    %v101 = vmul.f32 %v72, %v97
    %v102 = vmul.f32 %v74, %v97
    %v103 = vmul.f32 %v76, %v97
    %v104 = vmul.f32 %v78, %v97
    %v105 = vmul.f32 %v80, %v97
    %v106 = vmul.f32 %v82, %v97
    %v107 = vmul.f32 %v84, %v97
    %v108 = vmul.f32 %v86, %v97
    %v109 = vmul.f32 %v88, %v97
    %v110 = vmul.f32 %v90, %v97
    %v111 = vmul.f32 %v92, %v97
    %v112 = vmul.f32 %v94, %v97
    %v113 = vmul.f32 %v96, %v97
    %v114 = vsub.f32 %v49, %v98
    %v115 = vsub.f32 %v50, %v99
    %v116 = vsub.f32 %v51, %v100
    %v117 = vsub.f32 %v52, %v101
    %v118 = vsub.f32 %v53, %v102
    %v119 = vsub.f32 %v54, %v103
    %v120 = vsub.f32 %v55, %v104
    %v121 = vsub.f32 %v56, %v105
    %v122 = vsub.f32 %v57, %v106
    %v123 = vsub.f32 %v58, %v107
    %v124 = vsub.f32 %v59, %v108
    %v125 = vsub.f32 %v60, %v109
    %v126 = vsub.f32 %v61, %v110
    %v127 = vsub.f32 %v62, %v111
    %v128 = vsub.f32 %v63, %v112
    %v129 = vsub.f32 %v64, %v113
    %v130 = vmul.f32 %v114, %v114
    %v131 = vmul.f32 %v115, %v115
    %v132 = vmul.f32 %v116, %v116
    %v133 = vmul.f32 %v117, %v117
    %v134 = vmul.f32 %v118, %v118
    %v135 = vmul.f32 %v119, %v119
    %v136 = vmul.f32 %v120, %v120
    %v137 = vmul.f32 %v121, %v121
    %v138 = vmul.f32 %v122, %v122
    %v139 = vmul.f32 %v123, %v123
    %v140 = vmul.f32 %v124, %v124
    %v141 = vmul.f32 %v125, %v125
    %v142 = vmul.f32 %v126, %v126
    %v143 = vmul.f32 %v127, %v127
    %v144 = vmul.f32 %v128, %v128
    %v145 = vmul.f32 %v129, %v129
    %146 = vadd.xlane.f32.xlu0 %v130
    %v147 = vpop.xlane.xlu0 %146
    %148 = vadd.xlane.f32.xlu0 %v131
    %v149 = vpop.xlane.xlu0 %148
    %150 = vadd.xlane.f32.xlu0 %v132
    %v151 = vpop.xlane.xlu0 %150
    %152 = vadd.xlane.f32.xlu0 %v133
    %v153 = vpop.xlane.xlu0 %152
    %154 = vadd.xlane.f32.xlu0 %v134
    %v155 = vpop.xlane.xlu0 %154
    %156 = vadd.xlane.f32.xlu0 %v135
    %v157 = vpop.xlane.xlu0 %156
    %158 = vadd.xlane.f32.xlu0 %v136
    %v159 = vpop.xlane.xlu0 %158
    %160 = vadd.xlane.f32.xlu0 %v137
    %v161 = vpop.xlane.xlu0 %160
    %162 = vadd.xlane.f32.xlu0 %v138
    %v163 = vpop.xlane.xlu0 %162
    %164 = vadd.xlane.f32.xlu0 %v139
    %v165 = vpop.xlane.xlu0 %164
    %166 = vadd.xlane.f32.xlu0 %v140
    %v167 = vpop.xlane.xlu0 %166
    %168 = vadd.xlane.f32.xlu0 %v141
    %v169 = vpop.xlane.xlu0 %168
    %170 = vadd.xlane.f32.xlu0 %v142
    %v171 = vpop.xlane.xlu0 %170
    %172 = vadd.xlane.f32.xlu0 %v143
    %v173 = vpop.xlane.xlu0 %172
    %174 = vadd.xlane.f32.xlu0 %v144
    %v175 = vpop.xlane.xlu0 %174
    %176 = vadd.xlane.f32.xlu0 %v145
    %v177 = vpop.xlane.xlu0 %176
    %v178 = vmul.f32 %v147, %v97
    %v179 = vmul.f32 %v149, %v97
    %v180 = vmul.f32 %v151, %v97
    %v181 = vmul.f32 %v153, %v97
    %v182 = vmul.f32 %v155, %v97
    %v183 = vmul.f32 %v157, %v97
    %v184 = vmul.f32 %v159, %v97
    %v185 = vmul.f32 %v161, %v97
    %v186 = vmul.f32 %v163, %v97
    %v187 = vmul.f32 %v165, %v97
    %v188 = vmul.f32 %v167, %v97
    %v189 = vmul.f32 %v169, %v97
    %v190 = vmul.f32 %v171, %v97
    %v191 = vmul.f32 %v173, %v97
    %v192 = vmul.f32 %v175, %v97
    %v193 = vmul.f32 %v177, %v97
    %v194 = vadd.f32 %v178, 1e-05
    %v195 = vadd.f32 %v179, 1e-05
    %v196 = vadd.f32 %v180, 1e-05
    %v197 = vadd.f32 %v181, 1e-05
    %v198 = vadd.f32 %v182, 1e-05
    %v199 = vadd.f32 %v183, 1e-05
    %v200 = vadd.f32 %v184, 1e-05
    %v201 = vadd.f32 %v185, 1e-05
    %v202 = vadd.f32 %v186, 1e-05
    %v203 = vadd.f32 %v187, 1e-05
    %v204 = vadd.f32 %v188, 1e-05
    %v205 = vadd.f32 %v189, 1e-05
    %v206 = vadd.f32 %v190, 1e-05
    %v207 = vadd.f32 %v191, 1e-05
    %v208 = vadd.f32 %v192, 1e-05
    %v209 = vadd.f32 %v193, 1e-05
    %v210 = vrsqrt.pop %v194
    %v211 = vrsqrt.pop %v195
    %v212 = vrsqrt.pop %v196
    %v213 = vrsqrt.pop %v197
    %v214 = vrsqrt.pop %v198
    %v215 = vrsqrt.pop %v199
    %v216 = vrsqrt.pop %v200
    %v217 = vrsqrt.pop %v201
    %v218 = vrsqrt.pop %v202
    %v219 = vrsqrt.pop %v203
    %v220 = vrsqrt.pop %v204
    %v221 = vrsqrt.pop %v205
    %v222 = vrsqrt.pop %v206
    %v223 = vrsqrt.pop %v207
    %v224 = vrsqrt.pop %v208
    %v225 = vrsqrt.pop %v209
    %v226 = vmul.f32 %v114, %v210
    %v227 = vmul.f32 %v115, %v211
    %v228 = vmul.f32 %v116, %v212
    %v229 = vmul.f32 %v117, %v213
    %v230 = vmul.f32 %v118, %v214
    %v231 = vmul.f32 %v119, %v215
    %v232 = vmul.f32 %v120, %v216
    %v233 = vmul.f32 %v121, %v217
    %v234 = vmul.f32 %v122, %v218
    %v235 = vmul.f32 %v123, %v219
    %v236 = vmul.f32 %v124, %v220
    %v237 = vmul.f32 %v125, %v221
    %v238 = vmul.f32 %v126, %v222
    %v239 = vmul.f32 %v127, %v223
    %v240 = vmul.f32 %v128, %v224
    %v241 = vmul.f32 %v129, %v225
    %v242 = vld [vmem:[%s1] sm:$0x1]
    %v244 = vlaneseq
    %v245 = vshrl.u32 %v244, 7
    %v246 = vsub.s32 0, %v245
    %v247 = vrot.slane %v242, %v246
    %v249 = vmul.f32 %v226, %v247
    %v250 = vmul.f32 %v227, %v247
    %v251 = vmul.f32 %v228, %v247
    %v252 = vmul.f32 %v229, %v247
    %v253 = vmul.f32 %v230, %v247
    %v254 = vmul.f32 %v231, %v247
    %v255 = vmul.f32 %v232, %v247
    %v256 = vmul.f32 %v233, %v247
    %v257 = vmul.f32 %v234, %v247
    %v258 = vmul.f32 %v235, %v247
    %v259 = vmul.f32 %v236, %v247
    %v260 = vmul.f32 %v237, %v247
    %v261 = vmul.f32 %v238, %v247
    %v262 = vmul.f32 %v239, %v247
    %v263 = vmul.f32 %v240, %v247
    %v264 = vmul.f32 %v241, %v247
    %v265 = vld [vmem:[%s2] sm:$0x1]
    %v267 = vlaneseq
    %v268 = vshrl.u32 %v267, 7
    %v269 = vsub.s32 0, %v268
    %v270 = vrot.slane %v265, %v269
    %v272 = vadd.f32 %v249, %v270
    %v273 = vadd.f32 %v250, %v270
    %v274 = vadd.f32 %v251, %v270
    %v275 = vadd.f32 %v252, %v270
    %v276 = vadd.f32 %v253, %v270
    %v277 = vadd.f32 %v254, %v270
    %v278 = vadd.f32 %v255, %v270
    %v279 = vadd.f32 %v256, %v270
    %v280 = vadd.f32 %v257, %v270
    %v281 = vadd.f32 %v258, %v270
    %v282 = vadd.f32 %v259, %v270
    %v283 = vadd.f32 %v260, %v270
    %v284 = vadd.f32 %v261, %v270
    %v285 = vadd.f32 %v262, %v270
    %v286 = vadd.f32 %v263, %v270
    %v287 = vadd.f32 %v264, %v270
    %v288 = vld [vmem:[#allocation5] sm:$0xff]
    %v289 = vld [vmem:[#allocation5 + $0x8] sm:$0xff]
    %v290 = vld [vmem:[#allocation5 + $0x10] sm:$0xff]
    %v291 = vld [vmem:[#allocation5 + $0x18] sm:$0xff]
    %v292 = vld [vmem:[#allocation5 + $0x20] sm:$0xff]
    %v293 = vld [vmem:[#allocation5 + $0x28] sm:$0xff]
    %v294 = vld [vmem:[#allocation5 + $0x30] sm:$0xff]
    %v295 = vld [vmem:[#allocation5 + $0x38] sm:$0xff]
    %v296 = vld [vmem:[#allocation5 + $0x40] sm:$0xff]
    %v297 = vld [vmem:[#allocation5 + $0x48] sm:$0xff]
    %v298 = vld [vmem:[#allocation5 + $0x50] sm:$0xff]
    %v299 = vld [vmem:[#allocation5 + $0x58] sm:$0xff]
    %v300 = vld [vmem:[#allocation5 + $0x60] sm:$0xff]
    %v301 = vld [vmem:[#allocation5 + $0x68] sm:$0xff]
    %v302 = vld [vmem:[#allocation5 + $0x70] sm:$0xff]
    %v303 = vld [vmem:[#allocation5 + $0x78] sm:$0xff]
    %v304 = vld [vmem:[%s4] sm:$0x1]
    %v306 = vlaneseq
    %v307 = vshrl.u32 %v306, 7
    %v308 = vsub.s32 0, %v307
    %v309 = vrot.slane %v304, %v308
    %311 = vmatprep.subr.mxu0 0.0
    %312 = vmatpush1.msra.mxu0 %v303
    %313 = vmatprep.subr.mxu0 0.0
    %314 = vmatpush1.msra.mxu0 %v302
    %315 = vmatprep.subr.mxu0 0.0
    %316 = vmatpush1.msra.mxu0 %v301
    %317 = vmatprep.subr.mxu0 0.0
    %318 = vmatpush1.msra.mxu0 %v300
    %319 = vmatprep.subr.mxu0 0.0
    %320 = vmatpush1.msra.mxu0 %v299
    %321 = vmatprep.subr.mxu0 0.0
    %322 = vmatpush1.msra.mxu0 %v298
    %323 = vmatprep.subr.mxu0 0.0
    %324 = vmatpush1.msra.mxu0 %v297
    %325 = vmatprep.subr.mxu0 0.0
    %326 = vmatpush1.msra.mxu0 %v296
    %327 = vmatprep.subr.mxu0 0.0
    %328 = vmatpush1.msra.mxu0 %v295
    %329 = vmatprep.subr.mxu0 0.0
    %330 = vmatpush1.msra.mxu0 %v294
    %331 = vmatprep.subr.mxu0 0.0
    %332 = vmatpush1.msra.mxu0 %v293
    %333 = vmatprep.subr.mxu0 0.0
    %334 = vmatpush1.msra.mxu0 %v292
    %335 = vmatprep.subr.mxu0 0.0
    %336 = vmatpush1.msra.mxu0 %v291
    %337 = vmatprep.subr.mxu0 0.0
    %338 = vmatpush1.msra.mxu0 %v290
    %339 = vmatprep.subr.mxu0 0.0
    %340 = vmatpush1.msra.mxu0 %v289
    %341 = vmatprep.subr.mxu0 0.0
    %342 = vmatpush1.msra.mxu0 %v288
    %343 = vmatprep.subr.mxu0 0.0
    %344 = vmatpush2.msra.mxu0 0.0
    %345 = vmatprep.subr.mxu0 0.0
    %346 = vmatpush2.msra.mxu0 0.0
    %347 = vmatprep.subr.mxu0 0.0
    %348 = vmatpush2.msra.mxu0 0.0
    %349 = vmatprep.subr.mxu0 0.0
    %350 = vmatpush2.msra.mxu0 0.0
    %351 = vmatprep.subr.mxu0 0.0
    %352 = vmatpush2.msra.mxu0 0.0
    %353 = vmatprep.subr.mxu0 0.0
    %354 = vmatpush2.msra.mxu0 0.0
    %355 = vmatprep.subr.mxu0 0.0
    %356 = vmatpush2.msra.mxu0 0.0
    %357 = vmatprep.subr.mxu0 0.0
    %358 = vmatpush2.msra.mxu0 0.0
    %359 = vmatprep.subr.mxu0 0.0
    %360 = vmatpush2.msra.mxu0 0.0
    %361 = vmatprep.subr.mxu0 0.0
    %362 = vmatpush2.msra.mxu0 0.0
    %363 = vmatprep.subr.mxu0 0.0
    %364 = vmatpush2.msra.mxu0 0.0
    %365 = vmatprep.subr.mxu0 0.0
    %366 = vmatpush2.msra.mxu0 0.0
    %367 = vmatprep.subr.mxu0 0.0
    %368 = vmatpush2.msra.mxu0 0.0
    %369 = vmatprep.subr.mxu0 0.0
    %370 = vmatpush2.msra.mxu0 0.0
    %371 = vmatprep.subr.mxu0 0.0
    %372 = vmatpush2.msra.mxu0 0.0
    %373 = vmatprep.subr.mxu0 0.0
    %374 = vmatpush2.msra.mxu0 0.0
    %375 = vmatprep.mubr.f32.mxu0 0.0
    %376 = vmatmul.mubr.f32.gmra.mxu0 %v272
    %v377 = vpop.f32.mrf.mxu0
    %v378 = vadd.f32 %v309, %v377
    %v379 = vpop.f32.mrf.mxu0
    %380 = vmatprep.mubr.f32.mxu0 0.0
    %381 = vmatmul.mubr.f32.gmra.mxu0 %v273
    %v382 = vpop.f32.mrf.mxu0
    %v383 = vadd.f32 %v309, %v382
    %v384 = vpop.f32.mrf.mxu0
    %385 = vmatprep.mubr.f32.mxu0 0.0
    %386 = vmatmul.mubr.f32.gmra.mxu0 %v274
    %v387 = vpop.f32.mrf.mxu0
    %v388 = vadd.f32 %v309, %v387
    %v389 = vpop.f32.mrf.mxu0
    %390 = vmatprep.mubr.f32.mxu0 0.0
    %391 = vmatmul.mubr.f32.gmra.mxu0 %v275
    %v392 = vpop.f32.mrf.mxu0
    %v393 = vadd.f32 %v309, %v392
    %v394 = vpop.f32.mrf.mxu0
    %395 = vmatprep.mubr.f32.mxu0 0.0
    %396 = vmatmul.mubr.f32.gmra.mxu0 %v276
    %v397 = vpop.f32.mrf.mxu0
    %v398 = vadd.f32 %v309, %v397
    %v399 = vpop.f32.mrf.mxu0
    %400 = vmatprep.mubr.f32.mxu0 0.0
    %401 = vmatmul.mubr.f32.gmra.mxu0 %v277
    %v402 = vpop.f32.mrf.mxu0
    %v403 = vadd.f32 %v309, %v402
    %v404 = vpop.f32.mrf.mxu0
    %405 = vmatprep.mubr.f32.mxu0 0.0
    %406 = vmatmul.mubr.f32.gmra.mxu0 %v278
    %v407 = vpop.f32.mrf.mxu0
    %v408 = vadd.f32 %v309, %v407
    %v409 = vpop.f32.mrf.mxu0
    %410 = vmatprep.mubr.f32.mxu0 0.0
    %411 = vmatmul.mubr.f32.gmra.mxu0 %v279
    %v412 = vpop.f32.mrf.mxu0
    %v413 = vadd.f32 %v309, %v412
    %v414 = vpop.f32.mrf.mxu0
    %415 = vmatprep.mubr.f32.mxu0 0.0
    %416 = vmatmul.mubr.f32.gmra.mxu0 %v280
    %v417 = vpop.f32.mrf.mxu0
    %v418 = vadd.f32 %v309, %v417
    %v419 = vpop.f32.mrf.mxu0
    %420 = vmatprep.mubr.f32.mxu0 0.0
    %421 = vmatmul.mubr.f32.gmra.mxu0 %v281
    %v422 = vpop.f32.mrf.mxu0
    %v423 = vadd.f32 %v309, %v422
    %v424 = vpop.f32.mrf.mxu0
    %425 = vmatprep.mubr.f32.mxu0 0.0
    %426 = vmatmul.mubr.f32.gmra.mxu0 %v282
    %v427 = vpop.f32.mrf.mxu0
    %v428 = vadd.f32 %v309, %v427
    %v429 = vpop.f32.mrf.mxu0
    %430 = vmatprep.mubr.f32.mxu0 0.0
    %431 = vmatmul.mubr.f32.gmra.mxu0 %v283
    %v432 = vpop.f32.mrf.mxu0
    %v433 = vadd.f32 %v309, %v432
    %v434 = vpop.f32.mrf.mxu0
    %435 = vmatprep.mubr.f32.mxu0 0.0
    %436 = vmatmul.mubr.f32.gmra.mxu0 %v284
    %v437 = vpop.f32.mrf.mxu0
    %v438 = vadd.f32 %v309, %v437
    %v439 = vpop.f32.mrf.mxu0
    %440 = vmatprep.mubr.f32.mxu0 0.0
    %441 = vmatmul.mubr.f32.gmra.mxu0 %v285
    %v442 = vpop.f32.mrf.mxu0
    %v443 = vadd.f32 %v309, %v442
    %v444 = vpop.f32.mrf.mxu0
    %445 = vmatprep.mubr.f32.mxu0 0.0
    %446 = vmatmul.mubr.f32.gmra.mxu0 %v286
    %v447 = vpop.f32.mrf.mxu0
    %v448 = vadd.f32 %v309, %v447
    %v449 = vpop.f32.mrf.mxu0
    %450 = vmatprep.mubr.f32.mxu0 0.0
    %451 = vmatmul.mubr.f32.gmra.mxu0 %v287
    %v452 = vpop.f32.mrf.mxu0
    %v453 = vadd.f32 %v309, %v452
    %v454 = vpop.f32.mrf.mxu0
    %455 = vdwg.mxu0
    %456 = vst [vmem:[#allocation7] sm:$0xff] %v378
    %457 = vst [vmem:[#allocation7 + $0x8] sm:$0xff] %v383
    %458 = vst [vmem:[#allocation7 + $0x10] sm:$0xff] %v388
    %459 = vst [vmem:[#allocation7 + $0x18] sm:$0xff] %v393
    %460 = vst [vmem:[#allocation7 + $0x20] sm:$0xff] %v398
    %461 = vst [vmem:[#allocation7 + $0x28] sm:$0xff] %v403
    %462 = vst [vmem:[#allocation7 + $0x30] sm:$0xff] %v408
    %463 = vst [vmem:[#allocation7 + $0x38] sm:$0xff] %v413
    %464 = vst [vmem:[#allocation7 + $0x40] sm:$0xff] %v418
    %465 = vst [vmem:[#allocation7 + $0x48] sm:$0xff] %v423
    %466 = vst [vmem:[#allocation7 + $0x50] sm:$0xff] %v428
    %467 = vst [vmem:[#allocation7 + $0x58] sm:$0xff] %v433
    %468 = vst [vmem:[#allocation7 + $0x60] sm:$0xff] %v438
    %469 = vst [vmem:[#allocation7 + $0x68] sm:$0xff] %v443
    %470 = vst [vmem:[#allocation7 + $0x70] sm:$0xff] %v448
    %471 = vst [vmem:[#allocation7 + $0x78] sm:$0xff] %v453
    // Predicated region
    $region30: #{tpu_custom_call.1} parent=1 // pred_check
      _
    $region31: #{tpu_custom_call.1} parent=1 // pred_check_branch
      %473 = sbr.rel (0) target = $region33
    $region32: #{tpu_custom_call.1} parent=1 // pred_region
      %s475 = ssub.s32 2048, 2048
      %476 = vsyncadd [#allocation4], %s475
      %s477 = sshll.u32 [#allocation7], 4
      %s478 = int_to_ptr.vmem [resolvable:$true] %s477
      %483 = dma.vmem_to_hbm [thread:$0]  %s478, 2048, %s5, [#allocation4], 128, 128, 8
    $region33: #{tpu_custom_call.1} parent=1 // pred_fallthru
      _
    // Predicated region
    $region34: #{tpu_custom_call.1} parent=1 // pred_check
      _
    $region35: #{tpu_custom_call.1} parent=1 // pred_check_branch
      %485 = sbr.rel (0) target = $region37
    $region36: #{tpu_custom_call.1} parent=1 // pred_region
      %486 = dma.done [#allocation4], 2048
    $region37: #{tpu_custom_call.1} parent=1 // pred_fallthru
      _
    %487 = vsyncpa [#allocation3], 1
    %488 = vsyncpa [#allocation6], 1
    %489 = vsyncpa [#allocation4], 1

</llo_original>
